<compile_context>
chip_gen: v5e
topology: v5e:2x2
jax: 0.10.0
libtpu: 0.0.40
codegen_flags: <defaults>
</compile_context>

<pallas_src>
import functools

import jax
import jax.numpy as jnp
from jax.experimental import pallas as pl
from jax.experimental.pallas import tpu as pltpu

_LANE = 128
_VMEM_LIMIT = 32 * 1024 * 1024     # fits v7x scoped default; plenty for our tiles
_FUSED_MAX_NODES = 2048            # adj bf16 <= 8 MiB -> resident on all generations
_TM = 512                          # streamed-path row block (output sublanes)
_TK = 1024                         # streamed-path reduction block (adj columns)


# ----------------------------------------------------------------------------
# Fused kernel (small/medium graphs): adj, x, W1, W2, biases all VMEM-resident.
# adj is read from HBM exactly once and reused for both layers.
# ----------------------------------------------------------------------------
def _gcn_fused_kernel(adj_ref, x_ref, w1_ref, b1_ref, w2_ref, b2_ref, out_ref):
    bf = adj_ref.dtype
    # Layer 1: h1 = relu(adj @ (x @ W1) + b1)   (project-then-aggregate)
    p1 = jnp.dot(x_ref[...], w1_ref[...], preferred_element_type=jnp.float32)
    h1 = jnp.maximum(
        jnp.dot(adj_ref[...], p1.astype(bf), preferred_element_type=jnp.float32)
        + b1_ref[...],
        0.0,
    ).astype(bf)
    # F.dropout(..., training=False) is the identity in eval mode.
    # Layer 2: out = relu(adj @ (h1 @ W2) + b2)
    p2 = jnp.dot(h1, w2_ref[...], preferred_element_type=jnp.float32)
    out_ref[...] = jnp.maximum(
        jnp.dot(adj_ref[...], p2.astype(bf), preferred_element_type=jnp.float32)
        + b2_ref[...],
        0.0,
    ).astype(out_ref.dtype)


# ----------------------------------------------------------------------------
# Streaming path (large graphs): (a) projection kernel, (b) aggregation kernel.
# ----------------------------------------------------------------------------
def _proj_kernel(feat_ref, w_ref, out_ref):
    # proj = feat @ W, computed ONCE per layer (hoisted out of the aggregation).
    out_ref[...] = jnp.dot(
        feat_ref[...], w_ref[...], preferred_element_type=jnp.float32
    ).astype(out_ref.dtype)


def _project(feat_b, w_b, tp):
    n_p, fin = feat_b.shape
    fout = w_b.shape[1]
    return pl.pallas_call(
        _proj_kernel,
        out_shape=jax.ShapeDtypeStruct((n_p, fout), jnp.bfloat16),
        grid_spec=pltpu.PrefetchScalarGridSpec(
            num_scalar_prefetch=0,
            grid=(n_p // tp,),
            in_specs=[
                pl.BlockSpec((tp, fin), lambda i: (i, 0)),     # feature rows (streamed)
                pl.BlockSpec((fin, fout), lambda i: (0, 0)),   # resident weight
            ],
            out_specs=pl.BlockSpec((tp, fout), lambda i: (i, 0)),
        ),
        compiler_params=pltpu.CompilerParams(
            dimension_semantics=("parallel",),
            vmem_limit_bytes=_VMEM_LIMIT,
        ),
    )(feat_b, w_b)


def _agg_kernel(adj_ref, proj_ref, b_ref, out_ref, acc_ref, *, tk):
    # out[i] = relu( sum_k adj[i, k] @ proj[k] + b )
    k = pl.program_id(1)

    @pl.when(k == 0)
    def _():
        acc_ref[...] = jnp.zeros_like(acc_ref)

    start = pl.multiple_of(k * tk, tk)
    proj_blk = proj_ref[pl.ds(start, tk), :]        # slice of the VMEM-resident proj
    acc_ref[...] += jnp.dot(
        adj_ref[...], proj_blk, preferred_element_type=jnp.float32
    )

    @pl.when(k == pl.num_programs(1) - 1)
    def _():
        out_ref[...] = jnp.maximum(acc_ref[...] + b_ref[...], 0.0).astype(out_ref.dtype)


def _aggregate(adj_b, proj_b, b_f32, out_dtype, tm, tk):
    n_p = adj_b.shape[0]
    fout = proj_b.shape[1]
    grid = (n_p // tm, n_p // tk)
    kernel = functools.partial(_agg_kernel, tk=tk)
    return pl.pallas_call(
        kernel,
        out_shape=jax.ShapeDtypeStruct((n_p, fout), out_dtype),
        grid_spec=pltpu.PrefetchScalarGridSpec(
            num_scalar_prefetch=0,
            grid=grid,
            in_specs=[
                pl.BlockSpec((tm, tk), lambda i, k: (i, k)),       # adj tile (streamed, dbl-buffered)
                pl.BlockSpec((n_p, fout), lambda i, k: (0, 0)),    # proj: VMEM-resident (fetched once)
                pl.BlockSpec((1, fout), lambda i, k: (0, 0)),      # resident bias
            ],
            out_specs=pl.BlockSpec((tm, fout), lambda i, k: (i, 0)),
            scratch_shapes=[pltpu.VMEM((tm, fout), jnp.float32)],
        ),
        compiler_params=pltpu.CompilerParams(
            dimension_semantics=("parallel", "arbitrary"),   # grid_i >= 2 -> v7x megacore
            vmem_limit_bytes=_VMEM_LIMIT,
        ),
    )(adj_b, proj_b, b_f32)


# ----------------------------------------------------------------------------
# Wrapper
# ----------------------------------------------------------------------------
def _round_up(v, m):
    return (v + m - 1) // m * m


def _pad2(a, rows, cols):
    r, c = a.shape
    return jnp.pad(a, ((0, rows - r), (0, cols - c)))


def gcn_forward(x, adj, w1, b1, w2, b2):
    """Two-layer GCN forward. Pads to lane-dense (128-multiple) shapes, runs the
    fused or streamed Pallas kernels, slices the result back."""
    n, nfeat = x.shape
    nhid = w1.shape[1]
    nclass = w2.shape[1]

    f_p = _round_up(nfeat, _LANE)
    h_p = _round_up(nhid, _LANE)
    c_p = _round_up(nclass, _LANE)

    n_p = _round_up(n, _LANE)
    fused = n_p <= _FUSED_MAX_NODES
    if not fused:
        # Pad up to a multiple of the target tiles (512 | 1024) so tiles never
        # degenerate to 128x128 (zero rows/cols keep the math exact).
        n_p = _round_up(n_p, _TK)

    # Zero padding keeps the math exact: padded adj rows/cols are zero and padded
    # weight rows/cols are zero, so padded entries never leak into real rows.
    adj_b = _pad2(adj, n_p, n_p).astype(jnp.bfloat16)
    x_b = _pad2(x, n_p, f_p).astype(jnp.bfloat16)
    w1_b = _pad2(w1, f_p, h_p).astype(jnp.bfloat16)
    w2_b = _pad2(w2, h_p, c_p).astype(jnp.bfloat16)
    b1_p = _pad2(b1, 1, h_p).astype(jnp.float32)
    b2_p = _pad2(b2, 1, c_p).astype(jnp.float32)

    if fused:
        # Single pallas_call: adj streamed from HBM exactly once, both layers on-chip.
        out_p = pl.pallas_call(
            _gcn_fused_kernel,
            out_shape=jax.ShapeDtypeStruct((n_p, c_p), jnp.float32),
            compiler_params=pltpu.CompilerParams(vmem_limit_bytes=_VMEM_LIMIT),
        )(adj_b, x_b, w1_b, b1_p, w2_b, b2_p)
    else:
        tp = _TM
        # Layer 1: proj once, then aggregate (h1 kept in bf16 for the next MXU pass).
        proj1 = _project(x_b, w1_b, tp)
        h1_b = _aggregate(adj_b, proj1, b1_p, jnp.bfloat16, _TM, _TK)
        # F.dropout(..., training=False) is the identity in eval mode.
        # TODO(synk): training-mode dropout (pltpu.prng_random_bits mask) not emitted.
        # Layer 2.
        proj2 = _project(h1_b, w2_b, tp)
        out_p = _aggregate(adj_b, proj2, b2_p, jnp.float32, _TM, _TK)

    return out_p[:n, :nclass]


def _reference(x, adj, w1, b1, w2, b2):
    """Pure-JAX reference emulating the kernel's bf16-in / f32-accumulate numerics."""
    bf = jnp.bfloat16
    s1 = jnp.dot(x.astype(bf), w1.astype(bf), preferred_element_type=jnp.float32)
    h1 = jnp.maximum(
        jnp.dot(adj.astype(bf), s1.astype(bf), preferred_element_type=jnp.float32) + b1, 0.0
    )
    s2 = jnp.dot(h1.astype(bf), w2.astype(bf), preferred_element_type=jnp.float32)
    o = jnp.maximum(
        jnp.dot(adj.astype(bf), s2.astype(bf), preferred_element_type=jnp.float32) + b2, 0.0
    )
    return o


if __name__ == "__main__":
    # Small, forward-consistent shapes (GCNConv(nfeat, nhid) -> GCNConv(nhid, nclass)).
    N, nfeat, nhid, nclass = 16, 32, 32, 8

    key = jax.random.PRNGKey(0)
    kx, ka, kw1, kb1, kw2, kb2 = jax.random.split(key, 6)

    x = jax.random.normal(kx, (N, nfeat), dtype=jnp.float32)

    # Symmetric adjacency with self-loops and D^-1/2 A D^-1/2 normalization
    # (standard GCNConv preprocessing) — plain-JAX glue outside the kernel.
    a_raw = (jax.random.uniform(ka, (N, N)) > 0.7).astype(jnp.float32)
    a_sym = jnp.clip(a_raw + a_raw.T, 0.0, 1.0) + jnp.eye(N, dtype=jnp.float32)
    deg = jnp.sum(a_sym, axis=1)
    d_inv_sqrt = 1.0 / jnp.sqrt(deg)
    adj = a_sym * d_inv_sqrt[:, None] * d_inv_sqrt[None, :]

    w1 = jax.random.normal(kw1, (nfeat, nhid), dtype=jnp.float32) * 0.1
    b1 = jax.random.normal(kb1, (1, nhid), dtype=jnp.float32) * 0.1
    w2 = jax.random.normal(kw2, (nhid, nclass), dtype=jnp.float32) * 0.1
    b2 = jax.random.normal(kb2, (1, nclass), dtype=jnp.float32) * 0.1

    out = gcn_forward(x, adj, w1, b1, w2, b2)
    out = jax.block_until_ready(out)

    ref = _reference(x, adj, w1, b1, w2, b2)
    assert out.shape == (N, nclass)
    assert jnp.allclose(out, ref, atol=5e-3, rtol=5e-3), "mismatch vs reference"

    # NOTE: the module's forward really does apply ReLU after gc2 (no log_softmax),
    # so the final ReLU is intentional.
    print("KERNEL_OK")
</pallas_src>

<mosaic_0001>
module attributes {stable_mosaic.version = 11 : i64} {
  func.func @_gcn_fused_kernel(%arg0: memref<128x128xbf16, #tpu.memory_space<vmem>>, %arg1: memref<128x128xbf16, #tpu.memory_space<vmem>>, %arg2: memref<128x128xbf16, #tpu.memory_space<vmem>>, %arg3: memref<1x128xf32, #tpu.memory_space<vmem>>, %arg4: memref<128x128xbf16, #tpu.memory_space<vmem>>, %arg5: memref<1x128xf32, #tpu.memory_space<vmem>>, %arg6: memref<128x128xf32, #tpu.memory_space<vmem>>) attributes {dimension_semantics = [], scalar_prefetch = 0 : i64, scratch_operands = 0 : i64, tpu.core_type = #tpu.core_type<tc>} {
    %c0 = arith.constant 0 : index
    %c0_0 = arith.constant 0 : index
    %0 = vector.load %arg1[%c0, %c0_0] : memref<128x128xbf16, #tpu.memory_space<vmem>>, vector<128x128xbf16>
    %c0_1 = arith.constant 0 : index
    %c0_2 = arith.constant 0 : index
    %1 = vector.load %arg2[%c0_1, %c0_2] : memref<128x128xbf16, #tpu.memory_space<vmem>>, vector<128x128xbf16>
    %cst = arith.constant dense<0.000000e+00> : vector<128x128xf32>
    %2 = tpu.matmul %0, %1, %cst {dimension_numbers = #tpu.dot_dimension_numbers<[1], [0], [0], [1], [0, 0, 1, 1], [], []>} : vector<128x128xbf16>, vector<128x128xbf16>, vector<128x128xf32> -> vector<128x128xf32>
    %c0_3 = arith.constant 0 : index
    %c0_4 = arith.constant 0 : index
    %3 = vector.load %arg0[%c0_3, %c0_4] : memref<128x128xbf16, #tpu.memory_space<vmem>>, vector<128x128xbf16>
    %4 = arith.truncf %2 : vector<128x128xf32> to vector<128x128xbf16>
    %cst_5 = arith.constant dense<0.000000e+00> : vector<128x128xf32>
    %5 = tpu.matmul %3, %4, %cst_5 {dimension_numbers = #tpu.dot_dimension_numbers<[1], [0], [0], [1], [0, 0, 1, 1], [], []>} : vector<128x128xbf16>, vector<128x128xbf16>, vector<128x128xf32> -> vector<128x128xf32>
    %c0_6 = arith.constant 0 : index
    %c0_7 = arith.constant 0 : index
    %6 = vector.load %arg3[%c0_6, %c0_7] : memref<1x128xf32, #tpu.memory_space<vmem>>, vector<1x128xf32>
    %7 = vector.broadcast %6 : vector<1x128xf32> to vector<128x128xf32>
    %8 = arith.addf %5, %7 : vector<128x128xf32>
    %cst_8 = arith.constant 0.000000e+00 : f32
    %9 = vector.broadcast %cst_8 : f32 to vector<128x128xf32>
    %10 = arith.maximumf %8, %9 : vector<128x128xf32>
    %11 = arith.truncf %10 : vector<128x128xf32> to vector<128x128xbf16>
    %c0_9 = arith.constant 0 : index
    %c0_10 = arith.constant 0 : index
    %12 = vector.load %arg4[%c0_9, %c0_10] : memref<128x128xbf16, #tpu.memory_space<vmem>>, vector<128x128xbf16>
    %cst_11 = arith.constant dense<0.000000e+00> : vector<128x128xf32>
    %13 = tpu.matmul %11, %12, %cst_11 {dimension_numbers = #tpu.dot_dimension_numbers<[1], [0], [0], [1], [0, 0, 1, 1], [], []>} : vector<128x128xbf16>, vector<128x128xbf16>, vector<128x128xf32> -> vector<128x128xf32>
    %c0_12 = arith.constant 0 : index
    %c0_13 = arith.constant 0 : index
    %14 = vector.load %arg0[%c0_12, %c0_13] : memref<128x128xbf16, #tpu.memory_space<vmem>>, vector<128x128xbf16>
    %15 = arith.truncf %13 : vector<128x128xf32> to vector<128x128xbf16>
    %cst_14 = arith.constant dense<0.000000e+00> : vector<128x128xf32>
    %16 = tpu.matmul %14, %15, %cst_14 {dimension_numbers = #tpu.dot_dimension_numbers<[1], [0], [0], [1], [0, 0, 1, 1], [], []>} : vector<128x128xbf16>, vector<128x128xbf16>, vector<128x128xf32> -> vector<128x128xf32>
    %c0_15 = arith.constant 0 : index
    %c0_16 = arith.constant 0 : index
    %17 = vector.load %arg5[%c0_15, %c0_16] : memref<1x128xf32, #tpu.memory_space<vmem>>, vector<1x128xf32>
    %18 = vector.broadcast %17 : vector<1x128xf32> to vector<128x128xf32>
    %19 = arith.addf %16, %18 : vector<128x128xf32>
    %cst_17 = arith.constant 0.000000e+00 : f32
    %20 = vector.broadcast %cst_17 : f32 to vector<128x128xf32>
    %21 = arith.maximumf %19, %20 : vector<128x128xf32>
    %c0_18 = arith.constant 0 : index
    %c0_19 = arith.constant 0 : index
    %22 = vector.load %arg6[%c0_18, %c0_19] : memref<128x128xf32, #tpu.memory_space<vmem>>, vector<128x128xf32>
    tpu.vector_store %arg6[%c0_18, %c0_19], %21 {strides = array<i32>} : memref<128x128xf32, #tpu.memory_space<vmem>>, vector<128x128xf32>,
    return
  }
}

</mosaic_0001>

<llo_original>
// kernel: tpu_custom_call.1
$region0: #{tpu_custom_call.1}
  #allocation0 [shape = 'u32[]', space=smem, size = 0x4, offset = 0x4, fixed_abs, tag = 'smem constant byte address 0x4 - core index']
  #allocation1 [shape = 'u32[72,128]{1,0:T(1,128)}', space=vmem, size = 0x9000, scoped, tag = 'internal scratch']
  %s0 = inlined_call_operand.hbm [shape: bf16[128,128], index: 0, kind: input, shape index: {}]
  %s1 = inlined_call_operand.hbm [shape: bf16[128,128], index: 1, kind: input, shape index: {}]
  %s2 = inlined_call_operand.hbm [shape: bf16[128,128], index: 2, kind: input, shape index: {}]
  %s3 = inlined_call_operand.vmem [shape: f32[1,128], index: 3, kind: input, shape index: {}]
  %s4 = inlined_call_operand.hbm [shape: bf16[128,128], index: 4, kind: input, shape index: {}]
  %s5 = inlined_call_operand.vmem [shape: f32[1,128], index: 5, kind: input, shape index: {}]
  %s6 = inlined_call_operand.hbm [shape: f32[128,128], index: 6, kind: output, shape index: {}]
  %s7 = sld [smem:[#allocation0]]
  $region50: #{tpu_custom_call.1} parent=0
    _
  %s9 = ssub.s32 1, %s7
  %s10 = scalar_select 0, %s9, %s7
  $region1: #{tpu_custom_call.1} parent=0
    #allocation2 [shape = 'u8[32768]{0}', space=vmem, size = 0x8000, scoped, tag = 'input window, operand 0, single buffered']
    #allocation3 [shape = 's32[1]{0}', space=sflag, size = 0x4, scoped, tag = 'scoped memory for tpu_custom_call.1']
    #allocation4 [shape = 's32[1]{0}', space=sflag, size = 0x4, scoped, tag = 'scoped memory for tpu_custom_call.1']
    #allocation5 [shape = 'u8[32768]{0}', space=vmem, size = 0x8000, scoped, tag = 'input window, operand 1, single buffered']
    #allocation6 [shape = 's32[1]{0}', space=sflag, size = 0x4, scoped, tag = 'scoped memory for tpu_custom_call.1']
    #allocation7 [shape = 'u8[32768]{0}', space=vmem, size = 0x8000, scoped, tag = 'input window, operand 2, single buffered']
    #allocation8 [shape = 'u8[32768]{0}', space=vmem, size = 0x8000, scoped, tag = 'input window, operand 4, single buffered']
    #allocation9 [shape = 's32[1]{0}', space=sflag, size = 0x4, scoped, tag = 'scoped memory for tpu_custom_call.1']
    #allocation10 [shape = 'u8[65536]{0}', space=vmem, size = 0x10000, scoped, tag = 'output window, operand 0, single buffered']
    %11 = vsyncpa [#allocation3], 0
    %12 = vsyncpa [#allocation6], 0
    %13 = vsyncpa [#allocation9], 0
    %14 = vsyncpa [#allocation4], 0
    // Predicated region
    $region2: #{tpu_custom_call.1} parent=1 // pred_check
      _
    $region3: #{tpu_custom_call.1} parent=1 // pred_check_branch
      %16 = sbr.rel (0) target = $region5
    $region4: #{tpu_custom_call.1} parent=1 // pred_region
      %18 = vsyncadd [#allocation3], 0
      %s19 = sshll.u32 %s0, 4
      %s20 = int_to_ptr.hbm [resolvable:$true] %s19
      %s21 = sshll.u32 [#allocation2], 4
      %s22 = int_to_ptr.vmem [resolvable:$true] %s21
      %27 = dma.hbm_to_vmem [thread:$0]  %s20, 1024, %s22, [#allocation3], 64, 64, 4
    $region5: #{tpu_custom_call.1} parent=1 // pred_fallthru
      _
    // Predicated region
    $region6: #{tpu_custom_call.1} parent=1 // pred_check
      _
    $region7: #{tpu_custom_call.1} parent=1 // pred_check_branch
      %29 = sbr.rel (0) target = $region9
    $region8: #{tpu_custom_call.1} parent=1 // pred_region
      %31 = vsyncadd [#allocation6], 0
      %s32 = sshll.u32 %s1, 4
      %s33 = int_to_ptr.hbm [resolvable:$true] %s32
      %s34 = sshll.u32 [#allocation5], 4
      %s35 = int_to_ptr.vmem [resolvable:$true] %s34
      %40 = dma.hbm_to_vmem [thread:$0]  %s33, 1024, %s35, [#allocation6], 64, 64, 4
    $region9: #{tpu_custom_call.1} parent=1 // pred_fallthru
      _
    // Predicated region
    $region10: #{tpu_custom_call.1} parent=1 // pred_check
      _
    $region11: #{tpu_custom_call.1} parent=1 // pred_check_branch
      %42 = sbr.rel (0) target = $region13
    $region12: #{tpu_custom_call.1} parent=1 // pred_region
      %44 = vsyncadd [#allocation6], 0
      %s45 = sshll.u32 %s2, 4
      %s46 = int_to_ptr.hbm [resolvable:$true] %s45
      %s47 = sshll.u32 [#allocation7], 4
      %s48 = int_to_ptr.vmem [resolvable:$true] %s47
      %53 = dma.hbm_to_vmem [thread:$0]  %s46, 1024, %s48, [#allocation6], 64, 64, 4
    $region13: #{tpu_custom_call.1} parent=1 // pred_fallthru
      _
    // Predicated region
    $region14: #{tpu_custom_call.1} parent=1 // pred_check
      _
    $region15: #{tpu_custom_call.1} parent=1 // pred_check_branch
      %55 = sbr.rel (0) target = $region17
    $region16: #{tpu_custom_call.1} parent=1 // pred_region
      _
    $region17: #{tpu_custom_call.1} parent=1 // pred_fallthru
      _
    // Predicated region
    $region18: #{tpu_custom_call.1} parent=1 // pred_check
      _
    $region19: #{tpu_custom_call.1} parent=1 // pred_check_branch
      %57 = sbr.rel (0) target = $region21
    $region20: #{tpu_custom_call.1} parent=1 // pred_region
      %59 = vsyncadd [#allocation9], 0
      %s60 = sshll.u32 %s4, 4
      %s61 = int_to_ptr.hbm [resolvable:$true] %s60
      %s62 = sshll.u32 [#allocation8], 4
      %s63 = int_to_ptr.vmem [resolvable:$true] %s62
      %68 = dma.hbm_to_vmem [thread:$0]  %s61, 1024, %s63, [#allocation9], 64, 64, 4
    $region21: #{tpu_custom_call.1} parent=1 // pred_fallthru
      _
    // Predicated region
    $region22: #{tpu_custom_call.1} parent=1 // pred_check
      _
    $region23: #{tpu_custom_call.1} parent=1 // pred_check_branch
      %70 = sbr.rel (0) target = $region25
    $region24: #{tpu_custom_call.1} parent=1 // pred_region
      _
    $region25: #{tpu_custom_call.1} parent=1 // pred_fallthru
      _
    // Predicated region
    $region26: #{tpu_custom_call.1} parent=1 // pred_check
      _
    $region27: #{tpu_custom_call.1} parent=1 // pred_check_branch
      %72 = sbr.rel (0) target = $region29
    $region28: #{tpu_custom_call.1} parent=1 // pred_region
      %74 = dma.done [#allocation3], 1024
    $region29: #{tpu_custom_call.1} parent=1 // pred_fallthru
      _
    // Predicated region
    $region30: #{tpu_custom_call.1} parent=1 // pred_check
      _
    $region31: #{tpu_custom_call.1} parent=1 // pred_check_branch
      %76 = sbr.rel (0) target = $region33
    $region32: #{tpu_custom_call.1} parent=1 // pred_region
      %78 = dma.done [#allocation6], 1024
    $region33: #{tpu_custom_call.1} parent=1 // pred_fallthru
      _
    // Predicated region
    $region34: #{tpu_custom_call.1} parent=1 // pred_check
      _
    $region35: #{tpu_custom_call.1} parent=1 // pred_check_branch
      %80 = sbr.rel (0) target = $region37
    $region36: #{tpu_custom_call.1} parent=1 // pred_region
      %82 = dma.done [#allocation6], 1024
    $region37: #{tpu_custom_call.1} parent=1 // pred_fallthru
      _
    // Predicated region
    $region38: #{tpu_custom_call.1} parent=1 // pred_check
      _
    $region39: #{tpu_custom_call.1} parent=1 // pred_check_branch
      %84 = sbr.rel (0) target = $region41
    $region40: #{tpu_custom_call.1} parent=1 // pred_region
      %86 = dma.done [#allocation9], 1024
    $region41: #{tpu_custom_call.1} parent=1 // pred_fallthru
      _
    %v87 = vld [vmem:[#allocation5] sm:$0xf]
    %v88 = vld [vmem:[#allocation5 + $0x4] sm:$0xf]
    %v89 = vld [vmem:[#allocation5 + $0x8] sm:$0xf]
    %v90 = vld [vmem:[#allocation5 + $0xc] sm:$0xf]
    %v91 = vld [vmem:[#allocation5 + $0x10] sm:$0xf]
    %v92 = vld [vmem:[#allocation5 + $0x14] sm:$0xf]
    %v93 = vld [vmem:[#allocation5 + $0x18] sm:$0xf]
    %v94 = vld [vmem:[#allocation5 + $0x1c] sm:$0xf]
    %v95 = vld [vmem:[#allocation5 + $0x20] sm:$0xf]
    %v96 = vld [vmem:[#allocation5 + $0x24] sm:$0xf]
    %v97 = vld [vmem:[#allocation5 + $0x28] sm:$0xf]
    %v98 = vld [vmem:[#allocation5 + $0x2c] sm:$0xf]
    %v99 = vld [vmem:[#allocation5 + $0x30] sm:$0xf]
    %v100 = vld [vmem:[#allocation5 + $0x34] sm:$0xf]
    %v101 = vld [vmem:[#allocation5 + $0x38] sm:$0xf]
    %v102 = vld [vmem:[#allocation5 + $0x3c] sm:$0xf]
    %v103 = vld [vmem:[#allocation7] sm:$0xf]
    %v104 = vld [vmem:[#allocation7 + $0x4] sm:$0xf]
    %v105 = vld [vmem:[#allocation7 + $0x8] sm:$0xf]
    %v106 = vld [vmem:[#allocation7 + $0xc] sm:$0xf]
    %v107 = vld [vmem:[#allocation7 + $0x10] sm:$0xf]
    %v108 = vld [vmem:[#allocation7 + $0x14] sm:$0xf]
    %v109 = vld [vmem:[#allocation7 + $0x18] sm:$0xf]
    %v110 = vld [vmem:[#allocation7 + $0x1c] sm:$0xf]
    %v111 = vld [vmem:[#allocation7 + $0x20] sm:$0xf]
    %v112 = vld [vmem:[#allocation7 + $0x24] sm:$0xf]
    %v113 = vld [vmem:[#allocation7 + $0x28] sm:$0xf]
    %v114 = vld [vmem:[#allocation7 + $0x2c] sm:$0xf]
    %v115 = vld [vmem:[#allocation7 + $0x30] sm:$0xf]
    %v116 = vld [vmem:[#allocation7 + $0x34] sm:$0xf]
    %v117 = vld [vmem:[#allocation7 + $0x38] sm:$0xf]
    %v118 = vld [vmem:[#allocation7 + $0x3c] sm:$0xf]
    %v135 = vunpack.c.l.b16 %v87
    %v136 = vunpack.c.l.b16 %v88
    %v137 = vunpack.c.l.b16 %v89
    %v138 = vunpack.c.l.b16 %v90
    %v139 = vunpack.c.l.b16 %v91
    %v140 = vunpack.c.l.b16 %v92
    %v141 = vunpack.c.l.b16 %v93
    %v142 = vunpack.c.l.b16 %v94
    %v143 = vunpack.c.l.b16 %v95
    %v144 = vunpack.c.l.b16 %v96
    %v145 = vunpack.c.l.b16 %v97
    %v146 = vunpack.c.l.b16 %v98
    %v147 = vunpack.c.l.b16 %v99
    %v148 = vunpack.c.l.b16 %v100
    %v149 = vunpack.c.l.b16 %v101
    %v150 = vunpack.c.l.b16 %v102
    %v151 = vpack.c.b16 %v136, %v135
    %v152 = vpack.c.b16 %v138, %v137
    %v153 = vpack.c.b16 %v140, %v139
    %v154 = vpack.c.b16 %v142, %v141
    %v155 = vpack.c.b16 %v144, %v143
    %v156 = vpack.c.b16 %v146, %v145
    %v157 = vpack.c.b16 %v148, %v147
    %v158 = vpack.c.b16 %v150, %v149
    %v183 = vunpack.c.l.b16 %v103
    %v184 = vunpack.c.l.b16 %v104
    %v185 = vunpack.c.l.b16 %v105
    %v186 = vunpack.c.l.b16 %v106
    %v187 = vunpack.c.l.b16 %v107
    %v188 = vunpack.c.l.b16 %v108
    %v189 = vunpack.c.l.b16 %v109
    %v190 = vunpack.c.l.b16 %v110
    %v191 = vunpack.c.l.b16 %v111
    %v192 = vunpack.c.l.b16 %v112
    %v193 = vunpack.c.l.b16 %v113
    %v194 = vunpack.c.l.b16 %v114
    %v195 = vunpack.c.l.b16 %v115
    %v196 = vunpack.c.l.b16 %v116
    %v197 = vunpack.c.l.b16 %v117
    %v198 = vunpack.c.l.b16 %v118
    %v199 = vpack.c.b16 %v184, %v183
    %v200 = vpack.c.b16 %v186, %v185
    %v201 = vpack.c.b16 %v188, %v187
    %v202 = vpack.c.b16 %v190, %v189
    %v203 = vpack.c.b16 %v192, %v191
    %v204 = vpack.c.b16 %v194, %v193
    %v205 = vpack.c.b16 %v196, %v195
    %v206 = vpack.c.b16 %v198, %v197
    %215 = vmatpush.bf16.msra.mxu0 %v206
    %216 = vmatpush.bf16.msra.mxu0 %v205
    %217 = vmatpush.bf16.msra.mxu0 %v204
    %218 = vmatpush.bf16.msra.mxu0 %v203
    %219 = vmatpush.bf16.msra.mxu0 %v202
    %220 = vmatpush.bf16.msra.mxu0 %v201
    %221 = vmatpush.bf16.msra.mxu0 %v200
    %222 = vmatpush.bf16.msra.mxu0 %v199
    %223 = vmatmul.bf16.gmra.mxu0 %v151
    %v224 = vpop.f32.mrf.mxu0
    %v225 = vadd.f32 0.0, %v224
    %v226 = vpop.f32.mrf.mxu0
    %v227 = vadd.f32 0.0, %v226
    %228 = vmatmul.bf16.gmra.mxu0 %v152
    %v229 = vpop.f32.mrf.mxu0
    %v230 = vadd.f32 0.0, %v229
    %v231 = vpop.f32.mrf.mxu0
    %v232 = vadd.f32 0.0, %v231
    %233 = vmatmul.bf16.gmra.mxu0 %v153
    %v234 = vpop.f32.mrf.mxu0
    %v235 = vadd.f32 0.0, %v234
    %v236 = vpop.f32.mrf.mxu0
    %v237 = vadd.f32 0.0, %v236
    %238 = vmatmul.bf16.gmra.mxu0 %v154
    %v239 = vpop.f32.mrf.mxu0
    %v240 = vadd.f32 0.0, %v239
    %v241 = vpop.f32.mrf.mxu0
    %v242 = vadd.f32 0.0, %v241
    %243 = vmatmul.bf16.gmra.mxu0 %v155
    %v244 = vpop.f32.mrf.mxu0
    %v245 = vadd.f32 0.0, %v244
    %v246 = vpop.f32.mrf.mxu0
    %v247 = vadd.f32 0.0, %v246
    %248 = vmatmul.bf16.gmra.mxu0 %v156
    %v249 = vpop.f32.mrf.mxu0
    %v250 = vadd.f32 0.0, %v249
    %v251 = vpop.f32.mrf.mxu0
    %v252 = vadd.f32 0.0, %v251
    %253 = vmatmul.bf16.gmra.mxu0 %v157
    %v254 = vpop.f32.mrf.mxu0
    %v255 = vadd.f32 0.0, %v254
    %v256 = vpop.f32.mrf.mxu0
    %v257 = vadd.f32 0.0, %v256
    %258 = vmatmul.bf16.gmra.mxu0 %v158
    %v259 = vpop.f32.mrf.mxu0
    %v260 = vadd.f32 0.0, %v259
    %v261 = vpop.f32.mrf.mxu0
    %v262 = vadd.f32 0.0, %v261
    %263 = vdwg.mxu0
    %v264 = vld [vmem:[#allocation2] sm:$0xf]
    %v265 = vld [vmem:[#allocation2 + $0x4] sm:$0xf]
    %v266 = vld [vmem:[#allocation2 + $0x8] sm:$0xf]
    %v267 = vld [vmem:[#allocation2 + $0xc] sm:$0xf]
    %v268 = vld [vmem:[#allocation2 + $0x10] sm:$0xf]
    %v269 = vld [vmem:[#allocation2 + $0x14] sm:$0xf]
    %v270 = vld [vmem:[#allocation2 + $0x18] sm:$0xf]
    %v271 = vld [vmem:[#allocation2 + $0x1c] sm:$0xf]
    %v272 = vld [vmem:[#allocation2 + $0x20] sm:$0xf]
    %v273 = vld [vmem:[#allocation2 + $0x24] sm:$0xf]
    %v274 = vld [vmem:[#allocation2 + $0x28] sm:$0xf]
    %v275 = vld [vmem:[#allocation2 + $0x2c] sm:$0xf]
    %v276 = vld [vmem:[#allocation2 + $0x30] sm:$0xf]
    %v277 = vld [vmem:[#allocation2 + $0x34] sm:$0xf]
    %v278 = vld [vmem:[#allocation2 + $0x38] sm:$0xf]
    %v279 = vld [vmem:[#allocation2 + $0x3c] sm:$0xf]
    %v280 = vpack.c.bf16 %v227, %v225
    %v281 = vpack.c.bf16 %v232, %v230
    %v282 = vpack.c.bf16 %v237, %v235
    %v283 = vpack.c.bf16 %v242, %v240
    %v284 = vpack.c.bf16 %v247, %v245
    %v285 = vpack.c.bf16 %v252, %v250
    %v286 = vpack.c.bf16 %v257, %v255
    %v287 = vpack.c.bf16 %v262, %v260
    %v288 = vld [vmem:[%s3] sm:$0x1]
    %v290 = vperm.slane %v288, 0
    %v308 = vunpack.c.l.b16 %v264
    %v309 = vunpack.c.l.b16 %v265
    %v310 = vunpack.c.l.b16 %v266
    %v311 = vunpack.c.l.b16 %v267
    %v312 = vunpack.c.l.b16 %v268
    %v313 = vunpack.c.l.b16 %v269
    %v314 = vunpack.c.l.b16 %v270
    %v315 = vunpack.c.l.b16 %v271
    %v316 = vunpack.c.l.b16 %v272
    %v317 = vunpack.c.l.b16 %v273
    %v318 = vunpack.c.l.b16 %v274
    %v319 = vunpack.c.l.b16 %v275
    %v320 = vunpack.c.l.b16 %v276
    %v321 = vunpack.c.l.b16 %v277
    %v322 = vunpack.c.l.b16 %v278
    %v323 = vunpack.c.l.b16 %v279
    %v324 = vpack.c.b16 %v309, %v308
    %v325 = vpack.c.b16 %v311, %v310
    %v326 = vpack.c.b16 %v313, %v312
    %v327 = vpack.c.b16 %v315, %v314
    %v328 = vpack.c.b16 %v317, %v316
    %v329 = vpack.c.b16 %v319, %v318
    %v330 = vpack.c.b16 %v321, %v320
    %v331 = vpack.c.b16 %v323, %v322
    %340 = vmatpush.bf16.msra.mxu0 %v287
    %341 = vmatpush.bf16.msra.mxu0 %v286
    %342 = vmatpush.bf16.msra.mxu0 %v285
    %343 = vmatpush.bf16.msra.mxu0 %v284
    %344 = vmatpush.bf16.msra.mxu0 %v283
    %345 = vmatpush.bf16.msra.mxu0 %v282
    %346 = vmatpush.bf16.msra.mxu0 %v281
    %347 = vmatpush.bf16.msra.mxu0 %v280
    %348 = vmatmul.bf16.gmra.mxu0 %v324
    %v349 = vpop.f32.mrf.mxu0
    %v350 = vadd.f32 %v290, %v349
    %v351 = vpop.f32.mrf.mxu0
    %v352 = vadd.f32 %v290, %v351
    %353 = vmatmul.bf16.gmra.mxu0 %v325
    %v354 = vpop.f32.mrf.mxu0
    %v355 = vadd.f32 %v290, %v354
    %v356 = vpop.f32.mrf.mxu0
    %v357 = vadd.f32 %v290, %v356
    %358 = vmatmul.bf16.gmra.mxu0 %v326
    %v359 = vpop.f32.mrf.mxu0
    %v360 = vadd.f32 %v290, %v359
    %v361 = vpop.f32.mrf.mxu0
    %v362 = vadd.f32 %v290, %v361
    %363 = vmatmul.bf16.gmra.mxu0 %v327
    %v364 = vpop.f32.mrf.mxu0
    %v365 = vadd.f32 %v290, %v364
    %v366 = vpop.f32.mrf.mxu0
    %v367 = vadd.f32 %v290, %v366
    %368 = vmatmul.bf16.gmra.mxu0 %v328
    %v369 = vpop.f32.mrf.mxu0
    %v370 = vadd.f32 %v290, %v369
    %v371 = vpop.f32.mrf.mxu0
    %v372 = vadd.f32 %v290, %v371
    %373 = vmatmul.bf16.gmra.mxu0 %v329
    %v374 = vpop.f32.mrf.mxu0
    %v375 = vadd.f32 %v290, %v374
    %v376 = vpop.f32.mrf.mxu0
    %v377 = vadd.f32 %v290, %v376
    %378 = vmatmul.bf16.gmra.mxu0 %v330
    %v379 = vpop.f32.mrf.mxu0
    %v380 = vadd.f32 %v290, %v379
    %v381 = vpop.f32.mrf.mxu0
    %v382 = vadd.f32 %v290, %v381
    %383 = vmatmul.bf16.gmra.mxu0 %v331
    %v384 = vpop.f32.mrf.mxu0
    %v385 = vadd.f32 %v290, %v384
    %v386 = vpop.f32.mrf.mxu0
    %v387 = vadd.f32 %v290, %v386
    %388 = vdwg.mxu0
    %v389 = vmax.f32 %v350, 0.0
    %v390 = vmax.f32 %v352, 0.0
    %v391 = vmax.f32 %v355, 0.0
    %v392 = vmax.f32 %v357, 0.0
    %v393 = vmax.f32 %v360, 0.0
    %v394 = vmax.f32 %v362, 0.0
    %v395 = vmax.f32 %v365, 0.0
    %v396 = vmax.f32 %v367, 0.0
    %v397 = vmax.f32 %v370, 0.0
    %v398 = vmax.f32 %v372, 0.0
    %v399 = vmax.f32 %v375, 0.0
    %v400 = vmax.f32 %v377, 0.0
    %v401 = vmax.f32 %v380, 0.0
    %v402 = vmax.f32 %v382, 0.0
    %v403 = vmax.f32 %v385, 0.0
    %v404 = vmax.f32 %v387, 0.0
    %v405 = vpack.c.bf16 %v390, %v389
    %v406 = vpack.c.bf16 %v392, %v391
    %v407 = vpack.c.bf16 %v394, %v393
    %v408 = vpack.c.bf16 %v396, %v395
    %v409 = vpack.c.bf16 %v398, %v397
    %v410 = vpack.c.bf16 %v400, %v399
    %v411 = vpack.c.bf16 %v402, %v401
    %v412 = vpack.c.bf16 %v404, %v403
    %v413 = vld [vmem:[#allocation8] sm:$0xf]
    %v414 = vld [vmem:[#allocation8 + $0x4] sm:$0xf]
    %v415 = vld [vmem:[#allocation8 + $0x8] sm:$0xf]
    %v416 = vld [vmem:[#allocation8 + $0xc] sm:$0xf]
    %v417 = vld [vmem:[#allocation8 + $0x10] sm:$0xf]
    %v418 = vld [vmem:[#allocation8 + $0x14] sm:$0xf]
    %v419 = vld [vmem:[#allocation8 + $0x18] sm:$0xf]
    %v420 = vld [vmem:[#allocation8 + $0x1c] sm:$0xf]
    %v421 = vld [vmem:[#allocation8 + $0x20] sm:$0xf]
    %v422 = vld [vmem:[#allocation8 + $0x24] sm:$0xf]
    %v423 = vld [vmem:[#allocation8 + $0x28] sm:$0xf]
    %v424 = vld [vmem:[#allocation8 + $0x2c] sm:$0xf]
    %v425 = vld [vmem:[#allocation8 + $0x30] sm:$0xf]
    %v426 = vld [vmem:[#allocation8 + $0x34] sm:$0xf]
    %v427 = vld [vmem:[#allocation8 + $0x38] sm:$0xf]
    %v428 = vld [vmem:[#allocation8 + $0x3c] sm:$0xf]
    %v445 = vunpack.c.l.b16 %v413
    %v446 = vunpack.c.l.b16 %v414
    %v447 = vunpack.c.l.b16 %v415
    %v448 = vunpack.c.l.b16 %v416
    %v449 = vunpack.c.l.b16 %v417
    %v450 = vunpack.c.l.b16 %v418
    %v451 = vunpack.c.l.b16 %v419
    %v452 = vunpack.c.l.b16 %v420
    %v453 = vunpack.c.l.b16 %v421
    %v454 = vunpack.c.l.b16 %v422
    %v455 = vunpack.c.l.b16 %v423
    %v456 = vunpack.c.l.b16 %v424
    %v457 = vunpack.c.l.b16 %v425
    %v458 = vunpack.c.l.b16 %v426
    %v459 = vunpack.c.l.b16 %v427
    %v460 = vunpack.c.l.b16 %v428
    %v461 = vpack.c.b16 %v446, %v445
    %v462 = vpack.c.b16 %v448, %v447
    %v463 = vpack.c.b16 %v450, %v449
    %v464 = vpack.c.b16 %v452, %v451
    %v465 = vpack.c.b16 %v454, %v453
    %v466 = vpack.c.b16 %v456, %v455
    %v467 = vpack.c.b16 %v458, %v457
    %v468 = vpack.c.b16 %v460, %v459
    %477 = vmatpush.bf16.msra.mxu0 %v468
    %478 = vmatpush.bf16.msra.mxu0 %v467
    %479 = vmatpush.bf16.msra.mxu0 %v466
    %480 = vmatpush.bf16.msra.mxu0 %v465
    %481 = vmatpush.bf16.msra.mxu0 %v464
    %482 = vmatpush.bf16.msra.mxu0 %v463
    %483 = vmatpush.bf16.msra.mxu0 %v462
    %484 = vmatpush.bf16.msra.mxu0 %v461
    %485 = vmatmul.bf16.gmra.mxu0 %v405
    %v486 = vpop.f32.mrf.mxu0
    %v487 = vadd.f32 0.0, %v486
    %v488 = vpop.f32.mrf.mxu0
    %v489 = vadd.f32 0.0, %v488
    %490 = vmatmul.bf16.gmra.mxu0 %v406
    %v491 = vpop.f32.mrf.mxu0
    %v492 = vadd.f32 0.0, %v491
    %v493 = vpop.f32.mrf.mxu0
    %v494 = vadd.f32 0.0, %v493
    %495 = vmatmul.bf16.gmra.mxu0 %v407
    %v496 = vpop.f32.mrf.mxu0
    %v497 = vadd.f32 0.0, %v496
    %v498 = vpop.f32.mrf.mxu0
    %v499 = vadd.f32 0.0, %v498
    %500 = vmatmul.bf16.gmra.mxu0 %v408
    %v501 = vpop.f32.mrf.mxu0
    %v502 = vadd.f32 0.0, %v501
    %v503 = vpop.f32.mrf.mxu0
    %v504 = vadd.f32 0.0, %v503
    %505 = vmatmul.bf16.gmra.mxu0 %v409
    %v506 = vpop.f32.mrf.mxu0
    %v507 = vadd.f32 0.0, %v506
    %v508 = vpop.f32.mrf.mxu0
    %v509 = vadd.f32 0.0, %v508
    %510 = vmatmul.bf16.gmra.mxu0 %v410
    %v511 = vpop.f32.mrf.mxu0
    %v512 = vadd.f32 0.0, %v511
    %v513 = vpop.f32.mrf.mxu0
    %v514 = vadd.f32 0.0, %v513
    %515 = vmatmul.bf16.gmra.mxu0 %v411
    %v516 = vpop.f32.mrf.mxu0
    %v517 = vadd.f32 0.0, %v516
    %v518 = vpop.f32.mrf.mxu0
    %v519 = vadd.f32 0.0, %v518
    %520 = vmatmul.bf16.gmra.mxu0 %v412
    %v521 = vpop.f32.mrf.mxu0
    %v522 = vadd.f32 0.0, %v521
    %v523 = vpop.f32.mrf.mxu0
    %v524 = vadd.f32 0.0, %v523
    %525 = vdwg.mxu0
    %v526 = vpack.c.bf16 %v489, %v487
    %v527 = vpack.c.bf16 %v494, %v492
    %v528 = vpack.c.bf16 %v499, %v497
    %v529 = vpack.c.bf16 %v504, %v502
    %v530 = vpack.c.bf16 %v509, %v507
    %v531 = vpack.c.bf16 %v514, %v512
    %v532 = vpack.c.bf16 %v519, %v517
    %v533 = vpack.c.bf16 %v524, %v522
    %v534 = vld [vmem:[%s5] sm:$0x1]
    %v536 = vperm.slane %v534, 0
    %538 = vmatpush.bf16.msra.mxu0 %v533
    %539 = vmatpush.bf16.msra.mxu0 %v532
    %540 = vmatpush.bf16.msra.mxu0 %v531
    %541 = vmatpush.bf16.msra.mxu0 %v530
    %542 = vmatpush.bf16.msra.mxu0 %v529
    %543 = vmatpush.bf16.msra.mxu0 %v528
    %544 = vmatpush.bf16.msra.mxu0 %v527
    %545 = vmatpush.bf16.msra.mxu0 %v526
    %546 = vmatmul.bf16.gmra.mxu0 %v324
    %v547 = vpop.f32.mrf.mxu0
    %v548 = vadd.f32 %v536, %v547
    %v549 = vpop.f32.mrf.mxu0
    %v550 = vadd.f32 %v536, %v549
    %551 = vmatmul.bf16.gmra.mxu0 %v325
    %v552 = vpop.f32.mrf.mxu0
    %v553 = vadd.f32 %v536, %v552
    %v554 = vpop.f32.mrf.mxu0
    %v555 = vadd.f32 %v536, %v554
    %556 = vmatmul.bf16.gmra.mxu0 %v326
    %v557 = vpop.f32.mrf.mxu0
    %v558 = vadd.f32 %v536, %v557
    %v559 = vpop.f32.mrf.mxu0
    %v560 = vadd.f32 %v536, %v559
    %561 = vmatmul.bf16.gmra.mxu0 %v327
    %v562 = vpop.f32.mrf.mxu0
    %v563 = vadd.f32 %v536, %v562
    %v564 = vpop.f32.mrf.mxu0
    %v565 = vadd.f32 %v536, %v564
    %566 = vmatmul.bf16.gmra.mxu0 %v328
    %v567 = vpop.f32.mrf.mxu0
    %v568 = vadd.f32 %v536, %v567
    %v569 = vpop.f32.mrf.mxu0
    %v570 = vadd.f32 %v536, %v569
    %571 = vmatmul.bf16.gmra.mxu0 %v329
    %v572 = vpop.f32.mrf.mxu0
    %v573 = vadd.f32 %v536, %v572
    %v574 = vpop.f32.mrf.mxu0
    %v575 = vadd.f32 %v536, %v574
    %576 = vmatmul.bf16.gmra.mxu0 %v330
    %v577 = vpop.f32.mrf.mxu0
    %v578 = vadd.f32 %v536, %v577
    %v579 = vpop.f32.mrf.mxu0
    %v580 = vadd.f32 %v536, %v579
    %581 = vmatmul.bf16.gmra.mxu0 %v331
    %v582 = vpop.f32.mrf.mxu0
    %v583 = vadd.f32 %v536, %v582
    %v584 = vpop.f32.mrf.mxu0
    %v585 = vadd.f32 %v536, %v584
    %586 = vdwg.mxu0
    %v587 = vmax.f32 %v548, 0.0
    %v588 = vmax.f32 %v550, 0.0
    %v589 = vmax.f32 %v553, 0.0
    %v590 = vmax.f32 %v555, 0.0
    %v591 = vmax.f32 %v558, 0.0
    %v592 = vmax.f32 %v560, 0.0
    %v593 = vmax.f32 %v563, 0.0
    %v594 = vmax.f32 %v565, 0.0
    %v595 = vmax.f32 %v568, 0.0
    %v596 = vmax.f32 %v570, 0.0
    %v597 = vmax.f32 %v573, 0.0
    %v598 = vmax.f32 %v575, 0.0
    %v599 = vmax.f32 %v578, 0.0
    %v600 = vmax.f32 %v580, 0.0
    %v601 = vmax.f32 %v583, 0.0
    %v602 = vmax.f32 %v585, 0.0
    %603 = vst [vmem:[#allocation10] sm:$0xff] %v587
    %604 = vst [vmem:[#allocation10 + $0x8] sm:$0xff] %v588
    %605 = vst [vmem:[#allocation10 + $0x10] sm:$0xff] %v589
    %606 = vst [vmem:[#allocation10 + $0x18] sm:$0xff] %v590
    %607 = vst [vmem:[#allocation10 + $0x20] sm:$0xff] %v591
    %608 = vst [vmem:[#allocation10 + $0x28] sm:$0xff] %v592
    %609 = vst [vmem:[#allocation10 + $0x30] sm:$0xff] %v593
    %610 = vst [vmem:[#allocation10 + $0x38] sm:$0xff] %v594
    %611 = vst [vmem:[#allocation10 + $0x40] sm:$0xff] %v595
    %612 = vst [vmem:[#allocation10 + $0x48] sm:$0xff] %v596
    %613 = vst [vmem:[#allocation10 + $0x50] sm:$0xff] %v597
    %614 = vst [vmem:[#allocation10 + $0x58] sm:$0xff] %v598
    %615 = vst [vmem:[#allocation10 + $0x60] sm:$0xff] %v599
    %616 = vst [vmem:[#allocation10 + $0x68] sm:$0xff] %v600
    %617 = vst [vmem:[#allocation10 + $0x70] sm:$0xff] %v601
    %618 = vst [vmem:[#allocation10 + $0x78] sm:$0xff] %v602
    // Predicated region
    $region42: #{tpu_custom_call.1} parent=1 // pred_check
      _
    $region43: #{tpu_custom_call.1} parent=1 // pred_check_branch
      %620 = sbr.rel (0) target = $region45
    $region44: #{tpu_custom_call.1} parent=1 // pred_region
      %622 = vsyncadd [#allocation4], 0
      %s623 = sshll.u32 [#allocation10], 4
      %s624 = int_to_ptr.vmem [resolvable:$true] %s623
      %s625 = sshll.u32 %s6, 4
      %s626 = int_to_ptr.hbm [resolvable:$true] %s625
      %631 = dma.vmem_to_hbm [thread:$0]  %s624, 2048, %s626, [#allocation4], 128, 128, 8
    $region45: #{tpu_custom_call.1} parent=1 // pred_fallthru
      _
    // Predicated region
    $region46: #{tpu_custom_call.1} parent=1 // pred_check
      _
    $region47: #{tpu_custom_call.1} parent=1 // pred_check_branch
      %633 = sbr.rel (0) target = $region49
    $region48: #{tpu_custom_call.1} parent=1 // pred_region
      %635 = dma.done [#allocation4], 2048
    $region49: #{tpu_custom_call.1} parent=1 // pred_fallthru
      _
    %636 = vsyncpa [#allocation3], 1
    %637 = vsyncpa [#allocation6], 1
    %638 = vsyncpa [#allocation9], 1
    %639 = vsyncpa [#allocation4], 1

</llo_original>
